<compile_context>
chip_gen: v6e
topology: v6e:2x2x1
jax: 0.10.0
libtpu: 0.0.40
codegen_flags: <defaults>
</compile_context>

<pallas_src>
import jax
import jax.numpy as jnp
from jax import lax
from jax.experimental import pallas as pl
from jax.experimental.pallas import tpu as pltpu

NUM_LAYERS = 4        # num_layers=4 Outlooker blocks
MLP_HIDDEN = 3        # mlp_ratio=3 on dim=1 -> hidden width 3
LN_EPS = 1e-5         # (unused after LayerNorm(1) folding; kept for reference)

# columns of the per-layer scalar parameter table (lives in SMEM)
P_LN1_G, P_LN1_B, P_V_W, P_PROJ_W, P_PROJ_B, P_LN2_G, P_LN2_B = range(7)
P_FC1_W = 7    # 7..9   Mlp fc1 weight (Linear(1, 3))
P_FC1_B = 10   # 10..12 Mlp fc1 bias
P_FC2_W = 13   # 13..15 Mlp fc2 weight (Linear(3, 1))
P_FC2_B = 16   #        Mlp fc2 bias
N_SCALARS = 17


def _g2f_kernel(x_ref, ps_ref, attn_w_ref, attn_b_ref, qa_wt_ref, qa_b_ref,
                out_ref, x_acc):
    # x_ref:      (1, S, D)  VMEM  backbone hidden states for one batch element
    # ps_ref:     (L, N_SCALARS)   SMEM  per-layer scalar params
    # attn_w/b:   (1, K, K)  VMEM  this layer's Linear(1, (3D)^2) w & b (bf16)
    # qa_wt_ref:  (2, D)     VMEM  qa_outputs weight, transposed
    # qa_b_ref:   (2, 1)     VMEM  qa_outputs bias
    # out_ref:    (1, 2, S)  VMEM  qa logits, lane-dense (S last)
    # x_acc:      (S, D)     VMEM  residual-stream carry across the layer axis
    l = pl.program_id(1)
    n_l = pl.num_programs(1)

    S, D = x_acc.shape
    K = 3 * D

    @pl.when(l == 0)
    def _():
        x_acc[...] = x_ref[0].astype(jnp.float32)

    # per-layer scalars (dynamic SMEM row l)
    ln1_b = ps_ref[l, P_LN1_B]
    v_w = ps_ref[l, P_V_W]
    proj_w = ps_ref[l, P_PROJ_W]
    proj_b = ps_ref[l, P_PROJ_B]
    ln2_b = ps_ref[l, P_LN2_B]

    # ------------- OutlookAttention branch: x = x + attn(norm1(x)) -------------
    # nn.LayerNorm(1) over the implicit size-1 channel gives exactly `beta`
    # everywhere, so pooled query == ln1_b for every position: the [3D,3D]
    # softmax is shared by all positions and computed once per layer.
    logits_a = (ln1_b * attn_w_ref[0].astype(jnp.float32)
                + attn_b_ref[0].astype(jnp.float32))              # [K, K]
    logits_a = logits_a - jnp.max(logits_a, axis=-1, keepdims=True)
    p = jnp.exp(logits_a)
    a = p * pl.reciprocal(jnp.sum(p, axis=-1, keepdims=True), approx=True)

    # v = Linear(1,1,bias=False)(norm1(x)) == ln1_b * v_w everywhere.
    vc = ln1_b * v_w
    # nn.Unfold(kernel=(3, D), stride=(1, D), padding=(1, 0)):
    # win[s] = [v[s-1,:], v[s,:], v[s+1,:]] with zero padding at the ends.
    rows3 = lax.broadcasted_iota(jnp.int32, (S, K), 0)
    cols3 = lax.broadcasted_iota(jnp.int32, (S, K), 1)
    pad_mask = ((rows3 == 0) & (cols3 < D)) | ((rows3 == S - 1) & (cols3 >= 2 * D))
    win = jnp.where(pad_mask, 0.0, vc)                            # [S, K]

    # attention apply: out_w[s, k] = sum_j a[k, j] * win[s, j]  (single MXU
    # matmul, bf16 operands, f32 accumulation).
    out_w = lax.dot_general(
        win.astype(jnp.bfloat16), a.astype(jnp.bfloat16),
        dimension_numbers=(((1,), (1,)), ((), ())),
        preferred_element_type=jnp.float32)                        # [S, K]

    # F.fold(kernel=(3, D), stride=(1, D), padding=(1, 0)): overlap-add
    # folded[s] = c1[s] + c0[s+1] + c2[s-1]   (boundary terms dropped)
    c0 = out_w[:, 0:D]
    c1 = out_w[:, D:2 * D]
    c2 = out_w[:, 2 * D:3 * D]
    rows = lax.broadcasted_iota(jnp.int32, (S, D), 0)
    c0_up = pltpu.roll(c0, shift=S - 1, axis=0)   # c0_up[s] = c0[(s+1) mod S]
    c2_dn = pltpu.roll(c2, shift=1, axis=0)       # c2_dn[s] = c2[(s-1) mod S]
    folded = (c1
              + jnp.where(rows == S - 1, 0.0, c0_up)
              + jnp.where(rows == 0, 0.0, c2_dn))                  # [S, D]

    x = x_acc[...] + folded * proj_w + proj_b     # proj Linear(1,1); drop_path=0

    # ------------- MLP branch: x = x + mlp(norm2(x)) -------------
    # norm2(x) == ln2_b everywhere, so the MLP output is a per-layer constant;
    # evaluate it on a (1,1) tile and broadcast-add.
    y2 = jnp.full((1, 1), ln2_b, jnp.float32)
    m = jnp.full((1, 1), ps_ref[l, P_FC2_B], jnp.float32)
    for h in range(MLP_HIDDEN):
        # TODO(synk): nn.GELU is erf-exact; tanh approximation used here.
        hid = jax.nn.gelu(y2 * ps_ref[l, P_FC1_W + h] + ps_ref[l, P_FC1_B + h],
                          approximate=True)
        m = m + hid * ps_ref[l, P_FC2_W + h]
    x = x + m                                      # broadcast (1,1) -> (S, D)

    x_acc[...] = x

    # ------------- qa_outputs: Linear(D, 2), lane-dense [2, S] output ---------
    @pl.when(l == n_l - 1)
    def _():
        lg = lax.dot_general(
            qa_wt_ref[...], x,
            dimension_numbers=(((1,), (1,)), ((), ())),
            preferred_element_type=jnp.float32)                    # [2, S]
        out_ref[0] = lg + qa_b_ref[...]


def _vmem_limit_bytes(S, D):
    """Rough per-grid-step VMEM budget (with double-buffering) plus headroom."""
    K = 3 * D
    est = (
        2 * 2 * (K * K) * 2        # attn_w + attn_b tiles, bf16, double-buffered
        + 2 * (K * K) * 4          # f32 softmax temporaries
        + 2 * (S * D) * 4          # hidden input block (double-buffered)
        + (S * D) * 4              # x carry scratch
        + 4 * (S * K) * 4          # win / out_w transients
        + 2 * (2 * S) * 4          # lane-dense output block
    )
    # TODO(synk): on v7x (64 MiB VMEM) large embed_dims need pl.Buffered(1) on
    # the attention tables and/or S tiling with a halo; re-derive per chip.
    return int(min(max(est * 3 // 2, 32 * 1024 * 1024), 110 * 1024 * 1024))


def global2fine_noconv_forward(hidden, scal, attn_w, attn_b, qa_w, qa_b):
    """hidden: [B, S, D] backbone hidden states. Returns (start_logits, end_logits)."""
    B, S, D = hidden.shape
    K = 3 * D
    # Large attention tables travel in bf16 (f32 accumulation on the MXU).
    attn_w_bf = attn_w.astype(jnp.bfloat16)
    attn_b_bf = attn_b.astype(jnp.bfloat16)
    qa_wt = qa_w.T.astype(jnp.float32)              # (2, D)
    qa_b2 = qa_b.reshape(2, 1).astype(jnp.float32)  # (2, 1)

    # TODO(synk): for very long sequences, additionally tile S (halo of 1 row
    # per layer) so VMEM residency is decoupled from S.
    logits = pl.pallas_call(
        _g2f_kernel,
        out_shape=jax.ShapeDtypeStruct((B, 2, S), jnp.float32),
        grid=(B, NUM_LAYERS),
        in_specs=[
            pl.BlockSpec((1, S, D), lambda b, l: (b, 0, 0)),              # hidden
            pl.BlockSpec(memory_space=pltpu.MemorySpace.SMEM),            # scalars
            pl.BlockSpec((1, K, K), lambda b, l: (l, 0, 0)),              # attn_w (layer l)
            pl.BlockSpec((1, K, K), lambda b, l: (l, 0, 0)),              # attn_b (layer l)
            pl.BlockSpec((2, D), lambda b, l: (0, 0)),                    # qa_w^T
            pl.BlockSpec((2, 1), lambda b, l: (0, 0)),                    # qa_b
        ],
        out_specs=pl.BlockSpec((1, 2, S), lambda b, l: (b, 0, 0)),
        scratch_shapes=[pltpu.VMEM((S, D), jnp.float32)],                 # x carry
        compiler_params=pltpu.CompilerParams(
            dimension_semantics=("parallel", "arbitrary"),
            vmem_limit_bytes=_vmem_limit_bytes(S, D)),
    )(hidden, scal, attn_w_bf, attn_b_bf, qa_wt, qa_b2)

    start_logits = logits[:, 0, :]   # split(1, dim=-1) + squeeze(-1)
    end_logits = logits[:, 1, :]
    return start_logits, end_logits


def make_params(key, embed_dims):
    """Deterministic synthetic parameters matching the module's shapes."""
    L, K = NUM_LAYERS, 3 * embed_dims
    ks = jax.random.split(key, 5)
    scal = 0.05 * jax.random.normal(ks[0], (L, N_SCALARS), jnp.float32)
    scal = scal.at[:, P_LN1_G].set(1.0)   # LayerNorm gammas
    scal = scal.at[:, P_LN2_G].set(1.0)
    # Linear(1, (3D)^2) weight/bias, stored reshaped to [3D, 3D] per layer.
    attn_w = 0.05 * jax.random.normal(ks[1], (L, K, K), jnp.float32)
    attn_b = 0.05 * jax.random.normal(ks[2], (L, K, K), jnp.float32)
    qa_w = 0.05 * jax.random.normal(ks[3], (embed_dims, 2), jnp.float32)
    qa_b = 0.05 * jax.random.normal(ks[4], (1, 2), jnp.float32)
    return scal, attn_w, attn_b, qa_w, qa_b


if __name__ == "__main__":
    B, S, D = 2, 8, 32     # small test config: batch=2, seq=8, embed_dims=32
    key = jax.random.PRNGKey(0)
    kx, kp = jax.random.split(key)
    # Stand-in for backbone(...)[0]: hidden states [B, S, D].
    hidden = jax.random.normal(kx, (B, S, D), jnp.float32)
    params = make_params(kp, D)

    start_logits, end_logits = global2fine_noconv_forward(hidden, *params)
    jax.block_until_ready((start_logits, end_logits))

    assert start_logits.shape == (B, S) and end_logits.shape == (B, S)
    assert bool(jnp.all(jnp.isfinite(start_logits)))
    assert bool(jnp.all(jnp.isfinite(end_logits)))
    print("KERNEL_OK")
</pallas_src>

<mosaic_0001>
module attributes {stable_mosaic.version = 11 : i64} {
  func.func @_g2f_kernel(%arg0: i32, %arg1: i32, %arg2: memref<1x8x32xf32, #tpu.memory_space<vmem>>, %arg3: memref<4x17xf32, #tpu.memory_space<smem>>, %arg4: memref<1x96x96xbf16, #tpu.memory_space<vmem>>, %arg5: memref<1x96x96xbf16, #tpu.memory_space<vmem>>, %arg6: memref<2x32xf32, #tpu.memory_space<vmem>>, %arg7: memref<2x1xf32, #tpu.memory_space<vmem>>, %arg8: memref<1x2x8xf32, #tpu.memory_space<vmem>>, %arg9: memref<8x32xf32, #tpu.memory_space<vmem>>) attributes {dimension_semantics = [#tpu.dimension_semantics<parallel>, #tpu.dimension_semantics<arbitrary>], iteration_bounds = array<i64: 2, 4>, scalar_prefetch = 0 : i64, scratch_operands = 1 : i64, tpu.core_type = #tpu.core_type<tc>, window_params = [{transform_indices = @transform_0, window_bounds = array<i64: 1, 8, 32>}, {transform_indices = @transform_1, window_bounds = array<i64: 4, 17>}, {transform_indices = @transform_2, window_bounds = array<i64: 1, 96, 96>}, {transform_indices = @transform_3, window_bounds = array<i64: 1, 96, 96>}, {pipeline_mode = #tpu.pipeline_mode<synchronous>, transform_indices = @transform_4, window_bounds = array<i64: 2, 32>}, {pipeline_mode = #tpu.pipeline_mode<synchronous>, transform_indices = @transform_5, window_bounds = array<i64: 2, 1>}, {transform_indices = @transform_6, window_bounds = array<i64: 1, 2, 8>}]} {
    %c0_i32 = arith.constant 0 : i32
    %0 = arith.cmpi eq, %arg1, %c0_i32 : i32
    %1 = arith.extui %0 : i1 to i32
    %c0_i32_0 = arith.constant 0 : i32
    %2 = arith.cmpi ne, %1, %c0_i32_0 : i32
    scf.if %2 {
      %c0_32 = arith.constant 0 : index
      %c0_33 = arith.constant 0 : index
      %c0_34 = arith.constant 0 : index
      %162 = vector.load %arg2[%c0_32, %c0_33, %c0_34] : memref<1x8x32xf32, #tpu.memory_space<vmem>>, vector<1x8x32xf32>
      %163 = vector.shape_cast %162 : vector<1x8x32xf32> to vector<8x32xf32>
      %c0_35 = arith.constant 0 : index
      %c0_36 = arith.constant 0 : index
      %164 = vector.load %arg9[%c0_35, %c0_36] : memref<8x32xf32, #tpu.memory_space<vmem>>, vector<8x32xf32>
      tpu.vector_store %arg9[%c0_35, %c0_36], %163 {strides = array<i32>} : memref<8x32xf32, #tpu.memory_space<vmem>>, vector<8x32xf32>,
    } else {
    }
    %3 = arith.index_cast %arg1 : i32 to index
    %c1 = arith.constant 1 : index
    %4 = memref.load %arg3[%3, %c1] : memref<4x17xf32, #tpu.memory_space<smem>>
    %5 = arith.index_cast %arg1 : i32 to index
    %c2 = arith.constant 2 : index
    %6 = memref.load %arg3[%5, %c2] : memref<4x17xf32, #tpu.memory_space<smem>>
    %7 = arith.index_cast %arg1 : i32 to index
    %c3 = arith.constant 3 : index
    %8 = memref.load %arg3[%7, %c3] : memref<4x17xf32, #tpu.memory_space<smem>>
    %9 = arith.index_cast %arg1 : i32 to index
    %c4 = arith.constant 4 : index
    %10 = memref.load %arg3[%9, %c4] : memref<4x17xf32, #tpu.memory_space<smem>>
    %11 = arith.index_cast %arg1 : i32 to index
    %c6 = arith.constant 6 : index
    %12 = memref.load %arg3[%11, %c6] : memref<4x17xf32, #tpu.memory_space<smem>>
    %c0 = arith.constant 0 : index
    %c0_1 = arith.constant 0 : index
    %c0_2 = arith.constant 0 : index
    %13 = vector.load %arg4[%c0, %c0_1, %c0_2] : memref<1x96x96xbf16, #tpu.memory_space<vmem>>, vector<1x96x96xbf16>
    %14 = vector.shape_cast %13 : vector<1x96x96xbf16> to vector<96x96xbf16>
    %15 = arith.extf %14 : vector<96x96xbf16> to vector<96x96xf32>
    %16 = vector.broadcast %4 : f32 to vector<96x96xf32>
    %17 = arith.mulf %16, %15 : vector<96x96xf32>
    %c0_3 = arith.constant 0 : index
    %c0_4 = arith.constant 0 : index
    %c0_5 = arith.constant 0 : index
    %18 = vector.load %arg5[%c0_3, %c0_4, %c0_5] : memref<1x96x96xbf16, #tpu.memory_space<vmem>>, vector<1x96x96xbf16>
    %19 = vector.shape_cast %18 : vector<1x96x96xbf16> to vector<96x96xbf16>
    %20 = arith.extf %19 : vector<96x96xbf16> to vector<96x96xf32>
    %21 = arith.addf %17, %20 : vector<96x96xf32>
    %cst = arith.constant dense<0xFF800000> : vector<96xf32>
    %22 = vector.multi_reduction <maximumf>, %21, %cst [1] : vector<96x96xf32> to vector<96xf32>
    %23 = vector.shape_cast %22 : vector<96xf32> to vector<96x1xf32>
    %24 = vector.broadcast %23 : vector<96x1xf32> to vector<96x96xf32>
    %25 = arith.subf %21, %24 : vector<96x96xf32>
    %26 = math.exp %25 : vector<96x96xf32>
    %cst_6 = arith.constant dense<0.000000e+00> : vector<96xf32>
    %27 = vector.multi_reduction <add>, %26, %cst_6 [1] : vector<96x96xf32> to vector<96xf32>
    %28 = vector.shape_cast %27 : vector<96xf32> to vector<96x1xf32>
    %29 = tpu.reciprocal %28 {approx = true} : vector<96x1xf32> -> vector<96x1xf32>
    %30 = vector.broadcast %29 : vector<96x1xf32> to vector<96x96xf32>
    %31 = arith.mulf %26, %30 : vector<96x96xf32>
    %32 = arith.mulf %4, %6 : f32
    %33 = tpu.iota {dimensions = array<i32: 0>} : vector<8x96xi32>
    %34 = tpu.iota {dimensions = array<i32: 1>} : vector<8x96xi32>
    %c0_i32_7 = arith.constant 0 : i32
    %35 = vector.broadcast %c0_i32_7 : i32 to vector<8x96xi32>
    %36 = arith.cmpi eq, %33, %35 : vector<8x96xi32>
    %c32_i32 = arith.constant 32 : i32
    %37 = vector.broadcast %c32_i32 : i32 to vector<8x96xi32>
    %38 = arith.cmpi slt, %34, %37 : vector<8x96xi32>
    %39 = arith.andi %36, %38 : vector<8x96xi1>
    %c7_i32 = arith.constant 7 : i32
    %40 = vector.broadcast %c7_i32 : i32 to vector<8x96xi32>
    %41 = arith.cmpi eq, %33, %40 : vector<8x96xi32>
    %c64_i32 = arith.constant 64 : i32
    %42 = vector.broadcast %c64_i32 : i32 to vector<8x96xi32>
    %43 = arith.cmpi sge, %34, %42 : vector<8x96xi32>
    %44 = arith.andi %41, %43 : vector<8x96xi1>
    %45 = arith.ori %39, %44 : vector<8x96xi1>
    %cst_8 = arith.constant 0.000000e+00 : f32
    %46 = vector.broadcast %cst_8 : f32 to vector<8x96xf32>
    %47 = vector.broadcast %32 : f32 to vector<8x96xf32>
    %48 = arith.select %45, %46, %47 : vector<8x96xi1>, vector<8x96xf32>
    %49 = arith.truncf %48 : vector<8x96xf32> to vector<8x96xbf16>
    %50 = arith.truncf %31 : vector<96x96xf32> to vector<96x96xbf16>
    %cst_9 = arith.constant dense<0.000000e+00> : vector<8x96xf32>
    %51 = tpu.matmul %49, %50, %cst_9 {dimension_numbers = #tpu.dot_dimension_numbers<[1], [1], [0], [0], [0, 0, 1, 0], [], []>} : vector<8x96xbf16>, vector<96x96xbf16>, vector<8x96xf32> -> vector<8x96xf32>
    %52 = vector.extract_strided_slice %51 {offsets = [0, 0], sizes = [8, 32], strides = [1, 1]} : vector<8x96xf32> to vector<8x32xf32>
    %53 = vector.extract_strided_slice %51 {offsets = [0, 32], sizes = [8, 32], strides = [1, 1]} : vector<8x96xf32> to vector<8x32xf32>
    %54 = vector.extract_strided_slice %51 {offsets = [0, 64], sizes = [8, 32], strides = [1, 1]} : vector<8x96xf32> to vector<8x32xf32>
    %55 = tpu.iota {dimensions = array<i32: 0>} : vector<8x32xi32>
    %c7_i32_10 = arith.constant 7 : i32
    %56 = tpu.dynamic_rotate %52 by %c7_i32_10 dim 0 : vector<8x32xf32>, i32 -> vector<8x32xf32>
    %c1_i32 = arith.constant 1 : i32
    %57 = tpu.dynamic_rotate %54 by %c1_i32 dim 0 : vector<8x32xf32>, i32 -> vector<8x32xf32>
    %c7_i32_11 = arith.constant 7 : i32
    %58 = vector.broadcast %c7_i32_11 : i32 to vector<8x32xi32>
    %59 = arith.cmpi eq, %55, %58 : vector<8x32xi32>
    %cst_12 = arith.constant 0.000000e+00 : f32
    %60 = vector.broadcast %cst_12 : f32 to vector<8x32xf32>
    %61 = arith.select %59, %60, %56 : vector<8x32xi1>, vector<8x32xf32>
    %62 = arith.addf %53, %61 : vector<8x32xf32>
    %c0_i32_13 = arith.constant 0 : i32
    %63 = vector.broadcast %c0_i32_13 : i32 to vector<8x32xi32>
    %64 = arith.cmpi eq, %55, %63 : vector<8x32xi32>
    %cst_14 = arith.constant 0.000000e+00 : f32
    %65 = vector.broadcast %cst_14 : f32 to vector<8x32xf32>
    %66 = arith.select %64, %65, %57 : vector<8x32xi1>, vector<8x32xf32>
    %67 = arith.addf %62, %66 : vector<8x32xf32>
    %c0_15 = arith.constant 0 : index
    %c0_16 = arith.constant 0 : index
    %68 = vector.load %arg9[%c0_15, %c0_16] : memref<8x32xf32, #tpu.memory_space<vmem>>, vector<8x32xf32>
    %69 = vector.broadcast %8 : f32 to vector<8x32xf32>
    %70 = arith.mulf %67, %69 : vector<8x32xf32>
    %71 = arith.addf %68, %70 : vector<8x32xf32>
    %72 = vector.broadcast %10 : f32 to vector<8x32xf32>
    %73 = arith.addf %71, %72 : vector<8x32xf32>
    %74 = vector.broadcast %12 : f32 to vector<1x1xf32>
    %75 = arith.index_cast %arg1 : i32 to index
    %c16 = arith.constant 16 : index
    %76 = memref.load %arg3[%75, %c16] : memref<4x17xf32, #tpu.memory_space<smem>>
    %77 = vector.broadcast %76 : f32 to vector<1x1xf32>
    %78 = arith.index_cast %arg1 : i32 to index
    %c7 = arith.constant 7 : index
    %79 = memref.load %arg3[%78, %c7] : memref<4x17xf32, #tpu.memory_space<smem>>
    %80 = vector.broadcast %79 : f32 to vector<1x1xf32>
    %81 = arith.mulf %74, %80 : vector<1x1xf32>
    %82 = arith.index_cast %arg1 : i32 to index
    %c10 = arith.constant 10 : index
    %83 = memref.load %arg3[%82, %c10] : memref<4x17xf32, #tpu.memory_space<smem>>
    %84 = vector.broadcast %83 : f32 to vector<1x1xf32>
    %85 = arith.addf %81, %84 : vector<1x1xf32>
    %86 = arith.mulf %85, %85 : vector<1x1xf32>
    %87 = arith.mulf %85, %86 : vector<1x1xf32>
    %cst_17 = arith.constant 4.471500e-02 : f32
    %88 = vector.broadcast %cst_17 : f32 to vector<1x1xf32>
    %89 = arith.mulf %88, %87 : vector<1x1xf32>
    %90 = arith.addf %85, %89 : vector<1x1xf32>
    %cst_18 = arith.constant 0.797884583 : f32
    %91 = vector.broadcast %cst_18 : f32 to vector<1x1xf32>
    %92 = arith.mulf %91, %90 : vector<1x1xf32>
    %93 = math.tanh %92 : vector<1x1xf32>
    %cst_19 = arith.constant 1.000000e+00 : f32
    %94 = vector.broadcast %cst_19 : f32 to vector<1x1xf32>
    %95 = arith.addf %94, %93 : vector<1x1xf32>
    %cst_20 = arith.constant 5.000000e-01 : f32
    %96 = vector.broadcast %cst_20 : f32 to vector<1x1xf32>
    %97 = arith.mulf %96, %95 : vector<1x1xf32>
    %98 = arith.mulf %85, %97 : vector<1x1xf32>
    %99 = arith.index_cast %arg1 : i32 to index
    %c13 = arith.constant 13 : index
    %100 = memref.load %arg3[%99, %c13] : memref<4x17xf32, #tpu.memory_space<smem>>
    %101 = vector.broadcast %100 : f32 to vector<1x1xf32>
    %102 = arith.mulf %98, %101 : vector<1x1xf32>
    %103 = arith.addf %77, %102 : vector<1x1xf32>
    %104 = arith.index_cast %arg1 : i32 to index
    %c8 = arith.constant 8 : index
    %105 = memref.load %arg3[%104, %c8] : memref<4x17xf32, #tpu.memory_space<smem>>
    %106 = vector.broadcast %105 : f32 to vector<1x1xf32>
    %107 = arith.mulf %74, %106 : vector<1x1xf32>
    %108 = arith.index_cast %arg1 : i32 to index
    %c11 = arith.constant 11 : index
    %109 = memref.load %arg3[%108, %c11] : memref<4x17xf32, #tpu.memory_space<smem>>
    %110 = vector.broadcast %109 : f32 to vector<1x1xf32>
    %111 = arith.addf %107, %110 : vector<1x1xf32>
    %112 = arith.mulf %111, %111 : vector<1x1xf32>
    %113 = arith.mulf %111, %112 : vector<1x1xf32>
    %cst_21 = arith.constant 4.471500e-02 : f32
    %114 = vector.broadcast %cst_21 : f32 to vector<1x1xf32>
    %115 = arith.mulf %114, %113 : vector<1x1xf32>
    %116 = arith.addf %111, %115 : vector<1x1xf32>
    %cst_22 = arith.constant 0.797884583 : f32
    %117 = vector.broadcast %cst_22 : f32 to vector<1x1xf32>
    %118 = arith.mulf %117, %116 : vector<1x1xf32>
    %119 = math.tanh %118 : vector<1x1xf32>
    %cst_23 = arith.constant 1.000000e+00 : f32
    %120 = vector.broadcast %cst_23 : f32 to vector<1x1xf32>
    %121 = arith.addf %120, %119 : vector<1x1xf32>
    %cst_24 = arith.constant 5.000000e-01 : f32
    %122 = vector.broadcast %cst_24 : f32 to vector<1x1xf32>
    %123 = arith.mulf %122, %121 : vector<1x1xf32>
    %124 = arith.mulf %111, %123 : vector<1x1xf32>
    %125 = arith.index_cast %arg1 : i32 to index
    %c14 = arith.constant 14 : index
    %126 = memref.load %arg3[%125, %c14] : memref<4x17xf32, #tpu.memory_space<smem>>
    %127 = vector.broadcast %126 : f32 to vector<1x1xf32>
    %128 = arith.mulf %124, %127 : vector<1x1xf32>
    %129 = arith.addf %103, %128 : vector<1x1xf32>
    %130 = arith.index_cast %arg1 : i32 to index
    %c9 = arith.constant 9 : index
    %131 = memref.load %arg3[%130, %c9] : memref<4x17xf32, #tpu.memory_space<smem>>
    %132 = vector.broadcast %131 : f32 to vector<1x1xf32>
    %133 = arith.mulf %74, %132 : vector<1x1xf32>
    %134 = arith.index_cast %arg1 : i32 to index
    %c12 = arith.constant 12 : index
    %135 = memref.load %arg3[%134, %c12] : memref<4x17xf32, #tpu.memory_space<smem>>
    %136 = vector.broadcast %135 : f32 to vector<1x1xf32>
    %137 = arith.addf %133, %136 : vector<1x1xf32>
    %138 = arith.mulf %137, %137 : vector<1x1xf32>
    %139 = arith.mulf %137, %138 : vector<1x1xf32>
    %cst_25 = arith.constant 4.471500e-02 : f32
    %140 = vector.broadcast %cst_25 : f32 to vector<1x1xf32>
    %141 = arith.mulf %140, %139 : vector<1x1xf32>
    %142 = arith.addf %137, %141 : vector<1x1xf32>
    %cst_26 = arith.constant 0.797884583 : f32
    %143 = vector.broadcast %cst_26 : f32 to vector<1x1xf32>
    %144 = arith.mulf %143, %142 : vector<1x1xf32>
    %145 = math.tanh %144 : vector<1x1xf32>
    %cst_27 = arith.constant 1.000000e+00 : f32
    %146 = vector.broadcast %cst_27 : f32 to vector<1x1xf32>
    %147 = arith.addf %146, %145 : vector<1x1xf32>
    %cst_28 = arith.constant 5.000000e-01 : f32
    %148 = vector.broadcast %cst_28 : f32 to vector<1x1xf32>
    %149 = arith.mulf %148, %147 : vector<1x1xf32>
    %150 = arith.mulf %137, %149 : vector<1x1xf32>
    %151 = arith.index_cast %arg1 : i32 to index
    %c15 = arith.constant 15 : index
    %152 = memref.load %arg3[%151, %c15] : memref<4x17xf32, #tpu.memory_space<smem>>
    %153 = vector.broadcast %152 : f32 to vector<1x1xf32>
    %154 = arith.mulf %150, %153 : vector<1x1xf32>
    %155 = arith.addf %129, %154 : vector<1x1xf32>
    %156 = vector.broadcast %155 : vector<1x1xf32> to vector<8x32xf32>
    %157 = arith.addf %73, %156 : vector<8x32xf32>
    %c0_29 = arith.constant 0 : index
    %c0_30 = arith.constant 0 : index
    %158 = vector.load %arg9[%c0_29, %c0_30] : memref<8x32xf32, #tpu.memory_space<vmem>>, vector<8x32xf32>
    tpu.vector_store %arg9[%c0_29, %c0_30], %157 {strides = array<i32>} : memref<8x32xf32, #tpu.memory_space<vmem>>, vector<8x32xf32>,
    %c3_i32 = arith.constant 3 : i32
    %159 = arith.cmpi eq, %arg1, %c3_i32 : i32
    %160 = arith.extui %159 : i1 to i32
    %c0_i32_31 = arith.constant 0 : i32
    %161 = arith.cmpi ne, %160, %c0_i32_31 : i32
    scf.if %161 {
      %c0_32 = arith.constant 0 : index
      %c0_33 = arith.constant 0 : index
      %162 = vector.load %arg6[%c0_32, %c0_33] : memref<2x32xf32, #tpu.memory_space<vmem>>, vector<2x32xf32>
      %cst_34 = arith.constant dense<0.000000e+00> : vector<2x8xf32>
      %163 = tpu.matmul %162, %157, %cst_34 {dimension_numbers = #tpu.dot_dimension_numbers<[1], [1], [0], [0], [0, 0, 1, 0], [], []>} : vector<2x32xf32>, vector<8x32xf32>, vector<2x8xf32> -> vector<2x8xf32>
      %c0_35 = arith.constant 0 : index
      %c0_36 = arith.constant 0 : index
      %164 = vector.load %arg7[%c0_35, %c0_36] : memref<2x1xf32, #tpu.memory_space<vmem>>, vector<2x1xf32>
      %165 = vector.broadcast %164 : vector<2x1xf32> to vector<2x8xf32>
      %166 = arith.addf %163, %165 : vector<2x8xf32>
      %c0_37 = arith.constant 0 : index
      %c0_38 = arith.constant 0 : index
      %c0_39 = arith.constant 0 : index
      %167 = vector.load %arg8[%c0_37, %c0_38, %c0_39] : memref<1x2x8xf32, #tpu.memory_space<vmem>>, vector<1x2x8xf32>
      %168 = vector.shape_cast %167 : vector<1x2x8xf32> to vector<2x8xf32>
      %169 = vector.shape_cast %166 : vector<2x8xf32> to vector<1x2x8xf32>
      tpu.vector_store %arg8[%c0_37, %c0_38, %c0_39], %169 {strides = array<i32>} : memref<1x2x8xf32, #tpu.memory_space<vmem>>, vector<1x2x8xf32>,
    } else {
    }
    return
  }
  func.func @transform_0(%arg0: i32, %arg1: i32) -> (i32, i32, i32) {
    %c0_i32 = arith.constant 0 : i32
    %c0_i32_0 = arith.constant 0 : i32
    %c0_i32_1 = arith.constant 0 : i32
    return %arg0, %c0_i32, %c0_i32_0 : i32, i32, i32
  }
  func.func @transform_1(%arg0: i32, %arg1: i32) -> (i32, i32) {
    %c0_i32 = arith.constant 0 : i32
    %c0_i32_0 = arith.constant 0 : i32
    %c0_i32_1 = arith.constant 0 : i32
    return %c0_i32, %c0_i32_0 : i32, i32
  }
  func.func @transform_2(%arg0: i32, %arg1: i32) -> (i32, i32, i32) {
    %c0_i32 = arith.constant 0 : i32
    %c0_i32_0 = arith.constant 0 : i32
    %c0_i32_1 = arith.constant 0 : i32
    return %arg1, %c0_i32, %c0_i32_0 : i32, i32, i32
  }
  func.func @transform_3(%arg0: i32, %arg1: i32) -> (i32, i32, i32) {
    %c0_i32 = arith.constant 0 : i32
    %c0_i32_0 = arith.constant 0 : i32
    %c0_i32_1 = arith.constant 0 : i32
    return %arg1, %c0_i32, %c0_i32_0 : i32, i32, i32
  }
  func.func @transform_4(%arg0: i32, %arg1: i32) -> (i32, i32) {
    %c0_i32 = arith.constant 0 : i32
    %c0_i32_0 = arith.constant 0 : i32
    %c0_i32_1 = arith.constant 0 : i32
    return %c0_i32, %c0_i32_0 : i32, i32
  }
  func.func @transform_5(%arg0: i32, %arg1: i32) -> (i32, i32) {
    %c0_i32 = arith.constant 0 : i32
    %c0_i32_0 = arith.constant 0 : i32
    %c0_i32_1 = arith.constant 0 : i32
    return %c0_i32, %c0_i32_0 : i32, i32
  }
  func.func @transform_6(%arg0: i32, %arg1: i32) -> (i32, i32, i32) {
    %c0_i32 = arith.constant 0 : i32
    %c0_i32_0 = arith.constant 0 : i32
    %c0_i32_1 = arith.constant 0 : i32
    return %arg0, %c0_i32, %c0_i32_0 : i32, i32, i32
  }
}

</mosaic_0001>

<llo_original>
// kernel: tpu_custom_call.1
$region0: #{tpu_custom_call.1}
  #allocation0 [shape = 'u32[]', space=smem, size = 0x4, offset = 0x4, fixed_abs, tag = 'smem constant byte address 0x4 - core index']
  #allocation1 [shape = 'u32[144,128]{1,0:T(1,128)}', space=vmem, size = 0x12000, scoped, tag = 'internal scratch']
  #allocation2 [shape = 'f32[8,32]{1,0:T(8,128)}', space=vmem, size = 0x1000, scoped, tag = 'scratch operand']
  %s0 = inlined_call_operand.hbm [shape: f32[2,8,32], index: 0, kind: input, shape index: {}]
  %s1 = inlined_call_operand.vmem [shape: f32[4,17], index: 1, kind: input, shape index: {}]
  %s2 = inlined_call_operand.hbm [shape: bf16[4,96,96], index: 2, kind: input, shape index: {}]
  %s3 = inlined_call_operand.hbm [shape: bf16[4,96,96], index: 3, kind: input, shape index: {}]
  %s4 = inlined_call_operand.vmem [shape: f32[2,32], index: 4, kind: input, shape index: {}]
  %s5 = inlined_call_operand.vmem [shape: f32[2,1], index: 5, kind: input, shape index: {}]
  %s6 = inlined_call_operand.hbm [shape: f32[2,2,8], index: 6, kind: output, shape index: {}]
  %s7 = sld [smem:[#allocation0]]
  $region81: #{tpu_custom_call.1} parent=0
    _
  %s9 = ssub.s32 1, %s7
  %s10 = scalar_select 0, %s9, %s7
  $region1: #{tpu_custom_call.1} parent=0
    #allocation3 [shape = 'u8[8192]{0}', space=vmem, size = 0x2000, scoped, tag = 'input window, operand 0']
    #allocation4 [shape = 's32[2]{0}', space=sflag, size = 0x8, scoped, tag = 'scoped memory for tpu_custom_call.1']
    #allocation5 [shape = 's32[2]{0}', space=sflag, size = 0x8, scoped, tag = 'scoped memory for tpu_custom_call.1']
    #allocation6 [shape = 's32[2]{0}', space=sflag, size = 0x8, scoped, tag = 'scoped memory for tpu_custom_call.1']
    #allocation7 [shape = 'u8[2048]{0}', space=smem, size = 0x800, scoped, tag = 'input window, operand 1, single buffered']
    #allocation8 [shape = 'u8[49152]{0}', space=vmem, size = 0xc000, scoped, tag = 'input window, operand 2']
    #allocation9 [shape = 's32[2]{0}', space=sflag, size = 0x8, scoped, tag = 'scoped memory for tpu_custom_call.1']
    #allocation10 [shape = 'u8[49152]{0}', space=vmem, size = 0xc000, scoped, tag = 'input window, operand 3']
    #allocation11 [shape = 'u8[2048]{0}', space=vmem, size = 0x800, scoped, tag = 'output window, operand 0']
    %11 = vsyncpa [#allocation4], 0
    %s12 = scalar_lea.sflag [#allocation4], 1
    %13 = vsyncpa %s12, 0
    %14 = vsyncpa [#allocation6], 0
    %15 = vsyncpa [#allocation9], 0
    %s16 = scalar_lea.sflag [#allocation9], 1
    %17 = vsyncpa %s16, 0
    %18 = vsyncpa [#allocation5], 0
    %s19 = scalar_lea.sflag [#allocation5], 1
    %20 = vsyncpa %s19, 0
    loop: start=0, step=1, limit=10
    $region2: #{tpu_custom_call.1} parent=1 // loop_pre_header
      _
    $region3: #{tpu_custom_call.1} parent=1 // loop_header
      %s22 = sphi 0, %s26
      %p23 = scmp.ge.s32.totalorder %s22, 10
      %s29 = sphi 0, %s41
      %s30 = sphi 0, %s37
      %s31 = sphi 0, %s29
      %s32 = sphi 0, %s30
      %s33 = sphi 0, %s31
      %s34 = sphi 0, %s32
      %s44 = sphi 0, %s46
      %s47 = sphi 0, %s44
      %s48 = sphi 0, %s47
      %s64 = sphi 0, %s48
      %s68 = sphi 0, %s68
      %s70 = sphi 0, %s68
      %s71 = sphi 0, %s70
      %s85 = sphi 0, %s71
      %s91 = sphi 0, %s93
      %s94 = sphi 0, %s91
      %s95 = sphi 0, %s94
      %s111 = sphi 0, %s95
      %s117 = sphi 0, %s119
      %s120 = sphi 0, %s117
      %s121 = sphi 0, %s120
      %s137 = sphi 0, %s121
      %s141 = sphi 0, %s141
      %s143 = sphi 0, %s141
      %s144 = sphi 0, %s143
      %s158 = sphi 0, %s144
      %s162 = sphi 0, %s162
      %s164 = sphi 0, %s162
      %s165 = sphi 0, %s164
      %s179 = sphi 0, %s165
      %s185 = sphi 0, %s187
      %s188 = sphi 0, %s185
      %s189 = sphi 0, %s188
      %s205 = sphi 0, %s189
    $region4: #{tpu_custom_call.1} parent=1 // loop_header_branch
      %25 = sbr.rel (%p23) target = $region8
    $region5: #{tpu_custom_call.1} parent=1 // loop_body
      %s27 = ssub.s32 %s22, 1
      %s28 = ssub.s32 %s22, 2
      %s35 = sadd.s32 1, %s30
      %p36 = scmp.ge.s32.totalorder %s35, 4
      %s37 = scalar_select %p36, 0, %s35
      %s38 = sadd.s32 1, %s29
      %s39 = scalar_select %p36, %s38, %s29
      %p40 = scmp.ge.s32.totalorder %s39, 2
      %s41 = scalar_select %p40, 0, %s39
      %s42 = ssub.s32 %s29, %s41
      %p43 = scmp.eq.s32.totalorder %s42, 0
      %s45 = sadd.s32 %s44, 1
      %s46 = scalar_select %p43, %s44, %s45
      %p49 = pneg %p43
      %p50 = scmp.eq.s32.totalorder %s22, 7
      %p51 = por %p49, %p50
      %p52 = scmp.ne.s32.totalorder %s44, %s47
      %p53 = scmp.eq.s32.totalorder %s22, 0
      %p54 = por %p52, %p53
      %p55 = scmp.ne.s32.totalorder %s44, %s47
      %p56 = scmp.eq.s32.totalorder %s27, 7
      %p57 = por %p55, %p56
      %p58 = scmp.ne.s32.totalorder %s47, %s48
      %p59 = scmp.eq.s32.totalorder %s27, 0
      %p60 = por %p58, %p59
      %p61 = scmp.ne.s32.totalorder %s47, %s48
      %p62 = scmp.eq.s32.totalorder %s28, 7
      %p63 = por %p61, %p62
      %p65 = scmp.ne.s32.totalorder %s48, %s64
      %p66 = scmp.eq.s32.totalorder %s28, 0
      %p67 = por %p65, %p66
      %s69 = sadd.s32 %s68, 1
      %p72 = scmp.eq.s32.totalorder %s22, 7
      %p73 = scmp.ne.s32.totalorder %s68, %s70
      %p74 = scmp.eq.s32.totalorder %s22, 0
      %p75 = por %p73, %p74
      %p76 = scmp.ne.s32.totalorder %s68, %s70
      %p77 = scmp.eq.s32.totalorder %s27, 7
      %p78 = por %p76, %p77
      %p79 = scmp.ne.s32.totalorder %s70, %s71
      %p80 = scmp.eq.s32.totalorder %s27, 0
      %p81 = por %p79, %p80
      %p82 = scmp.ne.s32.totalorder %s70, %s71
      %p83 = scmp.eq.s32.totalorder %s28, 7
      %p84 = por %p82, %p83
      %p86 = scmp.ne.s32.totalorder %s71, %s85
      %p87 = scmp.eq.s32.totalorder %s28, 0
      %p88 = por %p86, %p87
      %s89 = ssub.s32 %s30, %s37
      %p90 = scmp.eq.s32.totalorder %s89, 0
      %s92 = sadd.s32 %s91, 1
      %s93 = scalar_select %p90, %s91, %s92
      %p96 = pneg %p90
      %p97 = scmp.eq.s32.totalorder %s22, 7
      %p98 = por %p96, %p97
      %p99 = scmp.ne.s32.totalorder %s91, %s94
      %p100 = scmp.eq.s32.totalorder %s22, 0
      %p101 = por %p99, %p100
      %p102 = scmp.ne.s32.totalorder %s91, %s94
      %p103 = scmp.eq.s32.totalorder %s27, 7
      %p104 = por %p102, %p103
      %p105 = scmp.ne.s32.totalorder %s94, %s95
      %p106 = scmp.eq.s32.totalorder %s27, 0
      %p107 = por %p105, %p106
      %p108 = scmp.ne.s32.totalorder %s94, %s95
      %p109 = scmp.eq.s32.totalorder %s28, 7
      %p110 = por %p108, %p109
      %p112 = scmp.ne.s32.totalorder %s95, %s111
      %p113 = scmp.eq.s32.totalorder %s28, 0
      %p114 = por %p112, %p113
      %s115 = ssub.s32 %s30, %s37
      %p116 = scmp.eq.s32.totalorder %s115, 0
      %s118 = sadd.s32 %s117, 1
      %s119 = scalar_select %p116, %s117, %s118
      %p122 = pneg %p116
      %p123 = scmp.eq.s32.totalorder %s22, 7
      %p124 = por %p122, %p123
      %p125 = scmp.ne.s32.totalorder %s117, %s120
      %p126 = scmp.eq.s32.totalorder %s22, 0
      %p127 = por %p125, %p126
      %p128 = scmp.ne.s32.totalorder %s117, %s120
      %p129 = scmp.eq.s32.totalorder %s27, 7
      %p130 = por %p128, %p129
      %p131 = scmp.ne.s32.totalorder %s120, %s121
      %p132 = scmp.eq.s32.totalorder %s27, 0
      %p133 = por %p131, %p132
      %p134 = scmp.ne.s32.totalorder %s120, %s121
      %p135 = scmp.eq.s32.totalorder %s28, 7
      %p136 = por %p134, %p135
      %p138 = scmp.ne.s32.totalorder %s121, %s137
      %p139 = scmp.eq.s32.totalorder %s28, 0
      %p140 = por %p138, %p139
      %s142 = sadd.s32 %s141, 1
      %p145 = scmp.eq.s32.totalorder %s22, 7
      %p146 = scmp.ne.s32.totalorder %s141, %s143
      %p147 = scmp.eq.s32.totalorder %s22, 0
      %p148 = por %p146, %p147
      %p149 = scmp.ne.s32.totalorder %s141, %s143
      %p150 = scmp.eq.s32.totalorder %s27, 7
      %p151 = por %p149, %p150
      %p152 = scmp.ne.s32.totalorder %s143, %s144
      %p153 = scmp.eq.s32.totalorder %s27, 0
      %p154 = por %p152, %p153
      %p155 = scmp.ne.s32.totalorder %s143, %s144
      %p156 = scmp.eq.s32.totalorder %s28, 7
      %p157 = por %p155, %p156
      %p159 = scmp.ne.s32.totalorder %s144, %s158
      %p160 = scmp.eq.s32.totalorder %s28, 0
      %p161 = por %p159, %p160
      %s163 = sadd.s32 %s162, 1
      %p166 = scmp.eq.s32.totalorder %s22, 7
      %p167 = scmp.ne.s32.totalorder %s162, %s164
      %p168 = scmp.eq.s32.totalorder %s22, 0
      %p169 = por %p167, %p168
      %p170 = scmp.ne.s32.totalorder %s162, %s164
      %p171 = scmp.eq.s32.totalorder %s27, 7
      %p172 = por %p170, %p171
      %p173 = scmp.ne.s32.totalorder %s164, %s165
      %p174 = scmp.eq.s32.totalorder %s27, 0
      %p175 = por %p173, %p174
      %p176 = scmp.ne.s32.totalorder %s164, %s165
      %p177 = scmp.eq.s32.totalorder %s28, 7
      %p178 = por %p176, %p177
      %p180 = scmp.ne.s32.totalorder %s165, %s179
      %p181 = scmp.eq.s32.totalorder %s28, 0
      %p182 = por %p180, %p181
      %s183 = ssub.s32 %s29, %s41
      %p184 = scmp.eq.s32.totalorder %s183, 0
      %s186 = sadd.s32 %s185, 1
      %s187 = scalar_select %p184, %s185, %s186
      %p190 = pneg %p184
      %p191 = scmp.eq.s32.totalorder %s22, 7
      %p192 = por %p190, %p191
      %p193 = scmp.ne.s32.totalorder %s185, %s188
      %p194 = scmp.eq.s32.totalorder %s22, 0
      %p195 = por %p193, %p194
      %p196 = scmp.ne.s32.totalorder %s185, %s188
      %p197 = scmp.eq.s32.totalorder %s27, 7
      %p198 = por %p196, %p197
      %p199 = scmp.ne.s32.totalorder %s188, %s189
      %p200 = scmp.eq.s32.totalorder %s27, 0
      %p201 = por %p199, %p200
      %p202 = scmp.ne.s32.totalorder %s188, %s189
      %p203 = scmp.eq.s32.totalorder %s28, 7
      %p204 = por %p202, %p203
      %p206 = scmp.ne.s32.totalorder %s189, %s205
      %p207 = scmp.eq.s32.totalorder %s28, 0
      %p208 = por %p206, %p207
      %p209 = scmp.le.s32.totalorder 1, %s22
      %p210 = scmp.lt.s32.totalorder %s22, 9
      %p211 = pnand %p209, %p210
      %p212 = pneg %p211
      // Predicated region
      $region9: #{tpu_custom_call.1} parent=5 // pred_check
        _
      $region10: #{tpu_custom_call.1} parent=5 // pred_check_branch
        %214 = sbr.rel (%p211) target = $region12
      $region11: #{tpu_custom_call.1} parent=5 // pred_region
        %s215 = ssub.s32 %s22, 1
        // Predicated region
        $region13: #{tpu_custom_call.1} parent=11 // pred_check
          %p216 = pneg %p81
        $region14: #{tpu_custom_call.1} parent=11 // pred_check_branch
          %218 = sbr.rel (%p216) target = $region16
        $region15: #{tpu_custom_call.1} parent=11 // pred_region
          %s220 = ssub.s32 64, 64
          %221 = vsyncadd [#allocation6], %s220
          %s223 = sshll.u32 %s1, 4
          %s224 = int_to_ptr.vmem [resolvable:$true] %s223
          %226 = dma.vmem_to_smem %s224, 64, [#allocation7], [#allocation6]
        $region16: #{tpu_custom_call.1} parent=11 // pred_fallthru
          _
        // Predicated region
        $region17: #{tpu_custom_call.1} parent=11 // pred_check
          %p227 = pneg %p154
        $region18: #{tpu_custom_call.1} parent=11 // pred_check_branch
          %229 = sbr.rel (%p227) target = $region20
        $region19: #{tpu_custom_call.1} parent=11 // pred_region
          _
        $region20: #{tpu_custom_call.1} parent=11 // pred_fallthru
          _
        // Predicated region
        $region21: #{tpu_custom_call.1} parent=11 // pred_check
          %p230 = pneg %p175
        $region22: #{tpu_custom_call.1} parent=11 // pred_check_branch
          %232 = sbr.rel (%p230) target = $region24
        $region23: #{tpu_custom_call.1} parent=11 // pred_region
          _
        $region24: #{tpu_custom_call.1} parent=11 // pred_fallthru
          _
      $region12: #{tpu_custom_call.1} parent=5 // pred_fallthru
        _
      %p233 = scmp.lt.s32.totalorder %s22, 8
      // Predicated region
      $region25: #{tpu_custom_call.1} parent=5 // pred_check
        %p234 = pneg %p233
      $region26: #{tpu_custom_call.1} parent=5 // pred_check_branch
        %236 = sbr.rel (%p234) target = $region28
      $region27: #{tpu_custom_call.1} parent=5 // pred_region
        // Predicated region
        $region29: #{tpu_custom_call.1} parent=27 // pred_check
          %p237 = pneg %p54
        $region30: #{tpu_custom_call.1} parent=27 // pred_check_branch
          %239 = sbr.rel (%p237) target = $region32
        $region31: #{tpu_custom_call.1} parent=27 // pred_region
          %s240 = sand.u32 %s44, 1
          %s241 = scalar_lea.sflag [#allocation4], %s240
          %s242 = sand.u32 %s44, 1
          %s243 = smul.addr %s242, 8
          %s244 = scalar_lea.vmem [#allocation3], %s243
          %s246 = ssub.s32 128, 128
          %247 = vsyncadd %s241, %s246
          %s248 = smul.addr %s29, 128
          %s249 = scalar_lea.hbm %s0, %s248
          %s251 = sshll.u32 %s244, 4
          %s252 = int_to_ptr.vmem [resolvable:$true] %s251
          %254 = dma.hbm_to_vmem [thread:$0]  %s249, 128, %s252, %s241
        $region32: #{tpu_custom_call.1} parent=27 // pred_fallthru
          _
        // Predicated region
        $region33: #{tpu_custom_call.1} parent=27 // pred_check
          %p255 = pneg %p101
        $region34: #{tpu_custom_call.1} parent=27 // pred_check_branch
          %257 = sbr.rel (%p255) target = $region36
        $region35: #{tpu_custom_call.1} parent=27 // pred_region
          %s258 = sand.u32 %s22, 1
          %s259 = scalar_lea.sflag [#allocation9], %s258
          %s260 = sand.u32 %s91, 1
          %s261 = smul.addr %s260, 48
          %s262 = scalar_lea.vmem [#allocation8], %s261
          %s264 = ssub.s32 768, 768
          %265 = vsyncadd %s259, %s264
          %s266 = smul.addr %s30, 12
          %s267 = smul.addr %s266, 64
          %s268 = scalar_lea.hbm %s2, %s267
          %s269 = sshll.u32 %s262, 4
          %s270 = int_to_ptr.vmem [resolvable:$true] %s269
          %275 = dma.hbm_to_vmem [thread:$0]  %s268, 768, %s270, %s259, 64, 64, 4
        $region36: #{tpu_custom_call.1} parent=27 // pred_fallthru
          _
        // Predicated region
        $region37: #{tpu_custom_call.1} parent=27 // pred_check
          %p276 = pneg %p127
        $region38: #{tpu_custom_call.1} parent=27 // pred_check_branch
          %278 = sbr.rel (%p276) target = $region40
        $region39: #{tpu_custom_call.1} parent=27 // pred_region
          %s279 = sand.u32 %s22, 1
          %s280 = scalar_lea.sflag [#allocation9], %s279
          %s281 = sand.u32 %s117, 1
          %s282 = smul.addr %s281, 48
          %s283 = scalar_lea.vmem [#allocation10], %s282
          %s285 = ssub.s32 768, 768
          %286 = vsyncadd %s280, %s285
          %s287 = smul.addr %s30, 12
          %s288 = smul.addr %s287, 64
          %s289 = scalar_lea.hbm %s3, %s288
          %s290 = sshll.u32 %s283, 4
          %s291 = int_to_ptr.vmem [resolvable:$true] %s290
          %296 = dma.hbm_to_vmem [thread:$0]  %s289, 768, %s291, %s280, 64, 64, 4
        $region40: #{tpu_custom_call.1} parent=27 // pred_fallthru
          _
      $region28: #{tpu_custom_call.1} parent=5 // pred_fallthru
        _
      %p297 = scmp.le.s32.totalorder 1, %s22
      %p298 = scmp.lt.s32.totalorder %s22, 9
      %p299 = pnand %p297, %p298
      %p300 = pneg %p299
      // Predicated region
      $region41: #{tpu_custom_call.1} parent=5 // pred_check
        _
      $region42: #{tpu_custom_call.1} parent=5 // pred_check_branch
        %302 = sbr.rel (%p299) target = $region44
      $region43: #{tpu_custom_call.1} parent=5 // pred_region
        %s303 = ssub.s32 %s22, 1
        %s304 = sand.u32 %s47, 1
        %s305 = scalar_lea.sflag [#allocation4], %s304
        %s306 = sand.u32 %s47, 1
        %s307 = smul.addr %s306, 8
        %s308 = scalar_lea.vmem [#allocation3], %s307
        // Predicated region
        $region45: #{tpu_custom_call.1} parent=43 // pred_check
          %p309 = pneg %p60
        $region46: #{tpu_custom_call.1} parent=43 // pred_check_branch
          %311 = sbr.rel (%p309) target = $region48
        $region47: #{tpu_custom_call.1} parent=43 // pred_region
          %312 = dma.done %s305, 128
        $region48: #{tpu_custom_call.1} parent=43 // pred_fallthru
          _
        // Predicated region
        $region49: #{tpu_custom_call.1} parent=43 // pred_check
          %p313 = pneg %p81
        $region50: #{tpu_custom_call.1} parent=43 // pred_check_branch
          %315 = sbr.rel (%p313) target = $region52
        $region51: #{tpu_custom_call.1} parent=43 // pred_region
          %316 = dma.done [#allocation6], 64
        $region52: #{tpu_custom_call.1} parent=43 // pred_fallthru
          _
        %s317 = sand.u32 %s27, 1
        %s318 = scalar_lea.sflag [#allocation9], %s317
        %s319 = sand.u32 %s94, 1
        %s320 = smul.addr %s319, 48
        %s321 = scalar_lea.vmem [#allocation8], %s320
        // Predicated region
        $region53: #{tpu_custom_call.1} parent=43 // pred_check
          %p322 = pneg %p107
        $region54: #{tpu_custom_call.1} parent=43 // pred_check_branch
          %324 = sbr.rel (%p322) target = $region56
        $region55: #{tpu_custom_call.1} parent=43 // pred_region
          %325 = dma.done %s318, 768
        $region56: #{tpu_custom_call.1} parent=43 // pred_fallthru
          _
        %s326 = sand.u32 %s27, 1
        %s327 = scalar_lea.sflag [#allocation9], %s326
        %s328 = sand.u32 %s120, 1
        %s329 = smul.addr %s328, 48
        %s330 = scalar_lea.vmem [#allocation10], %s329
        // Predicated region
        $region57: #{tpu_custom_call.1} parent=43 // pred_check
          %p331 = pneg %p133
        $region58: #{tpu_custom_call.1} parent=43 // pred_check_branch
          %333 = sbr.rel (%p331) target = $region60
        $region59: #{tpu_custom_call.1} parent=43 // pred_region
          %334 = dma.done %s327, 768
        $region60: #{tpu_custom_call.1} parent=43 // pred_fallthru
          _
        %335 = sfence
        %s336 = sand.u32 %s47, 1
        %s337 = scalar_lea.sflag [#allocation4], %s336
        %s338 = sand.u32 %s47, 1
        %s339 = smul.addr %s338, 8
        %s340 = scalar_lea.vmem [#allocation3], %s339
        %p341 = pneg %p60
        %p342 = pneg %p57
        %p343 = pneg %p81
        %p344 = pneg %p78
        %s345 = sand.u32 %s27, 1
        %s346 = scalar_lea.sflag [#allocation9], %s345
        %s347 = sand.u32 %s94, 1
        %s348 = smul.addr %s347, 48
        %s349 = scalar_lea.vmem [#allocation8], %s348
        %p350 = pneg %p107
        %p351 = pneg %p104
        %s352 = sand.u32 %s27, 1
        %s353 = scalar_lea.sflag [#allocation9], %s352
        %s354 = sand.u32 %s120, 1
        %s355 = smul.addr %s354, 48
        %s356 = scalar_lea.vmem [#allocation10], %s355
        %p357 = pneg %p133
        %p358 = pneg %p130
        %p359 = pneg %p154
        %p360 = pneg %p151
        %p361 = pneg %p175
        %p362 = pneg %p172
        %p363 = pneg %p201
        %p364 = pneg %p198
        %s365 = sand.u32 %s188, 1
        %s366 = scalar_lea.sflag [#allocation5], %s365
        %s367 = sand.u32 %s188, 1
        %s368 = smul.addr %s367, 2
        %s369 = scalar_lea.vmem [#allocation11], %s368
        %p371 = scmp.eq.s32.totalorder %s32, 0
        // Predicated region
        $region61: #{tpu_custom_call.1} parent=43 // pred_check
          %p372 = pneg %p371
        $region62: #{tpu_custom_call.1} parent=43 // pred_check_branch
          %374 = sbr.rel (%p372) target = $region64
        $region63: #{tpu_custom_call.1} parent=43 // pred_region
          %v375 = vld [vmem:[%s308] sm:$0xff]
          %vm376 = vcmask 261120
          %377 = vst.msk [vmem:[#allocation2] sm:$0xff] %vm376, %v375
        $region64: #{tpu_custom_call.1} parent=43 // pred_fallthru
          _
        %s378 = smul.u32 %s32, 128
        %s379 = sadd.s32 %s378, 1
        %s380 = sld [smem:[#allocation7 + %s379]]
        %s381 = sadd.s32 %s378, 2
        %s382 = sld [smem:[#allocation7 + %s381]]
        %s383 = sadd.s32 %s378, 3
        %s384 = sld [smem:[#allocation7 + %s383]]
        %s385 = sadd.s32 %s378, 4
        %s386 = sld [smem:[#allocation7 + %s385]]
        %s387 = sadd.s32 %s378, 6
        %s388 = sld [smem:[#allocation7 + %s387]]
        %v389 = vld [vmem:[%s321] sm:$0xf]
        %v390 = vld [vmem:[%s321 + $0x4] sm:$0xf]
        %v391 = vld [vmem:[%s321 + $0x8] sm:$0xf]
        %v392 = vld [vmem:[%s321 + $0xc] sm:$0xf]
        %v393 = vld [vmem:[%s321 + $0x10] sm:$0xf]
        %v394 = vld [vmem:[%s321 + $0x14] sm:$0xf]
        %v395 = vld [vmem:[%s321 + $0x18] sm:$0xf]
        %v396 = vld [vmem:[%s321 + $0x1c] sm:$0xf]
        %v397 = vld [vmem:[%s321 + $0x20] sm:$0xf]
        %v398 = vld [vmem:[%s321 + $0x24] sm:$0xf]
        %v399 = vld [vmem:[%s321 + $0x28] sm:$0xf]
        %v400 = vld [vmem:[%s321 + $0x2c] sm:$0xf]
        %v401 = vunpack.c.l.bf16 %v389
        %v402 = vunpack.c.l.bf16 %v390
        %v403 = vunpack.c.l.bf16 %v391
        %v404 = vunpack.c.l.bf16 %v392
        %v405 = vunpack.c.l.bf16 %v393
        %v406 = vunpack.c.l.bf16 %v394
        %v407 = vunpack.c.l.bf16 %v395
        %v408 = vunpack.c.l.bf16 %v396
        %v409 = vunpack.c.l.bf16 %v397
        %v410 = vunpack.c.l.bf16 %v398
        %v411 = vunpack.c.l.bf16 %v399
        %v412 = vunpack.c.l.bf16 %v400
        %v413 = vstv %s380
        %v414 = vmul.f32 %v413, %v401
        %v415 = vmul.f32 %v413, %v402
        %v416 = vmul.f32 %v413, %v403
        %v417 = vmul.f32 %v413, %v404
        %v418 = vmul.f32 %v413, %v405
        %v419 = vmul.f32 %v413, %v406
        %v420 = vmul.f32 %v413, %v407
        %v421 = vmul.f32 %v413, %v408
        %v422 = vmul.f32 %v413, %v409
        %v423 = vmul.f32 %v413, %v410
        %v424 = vmul.f32 %v413, %v411
        %v425 = vmul.f32 %v413, %v412
        %v426 = vld [vmem:[%s330] sm:$0xf]
        %v427 = vld [vmem:[%s330 + $0x4] sm:$0xf]
        %v428 = vld [vmem:[%s330 + $0x8] sm:$0xf]
        %v429 = vld [vmem:[%s330 + $0xc] sm:$0xf]
        %v430 = vld [vmem:[%s330 + $0x10] sm:$0xf]
        %v431 = vld [vmem:[%s330 + $0x14] sm:$0xf]
        %v432 = vld [vmem:[%s330 + $0x18] sm:$0xf]
        %v433 = vld [vmem:[%s330 + $0x1c] sm:$0xf]
        %v434 = vld [vmem:[%s330 + $0x20] sm:$0xf]
        %v435 = vld [vmem:[%s330 + $0x24] sm:$0xf]
        %v436 = vld [vmem:[%s330 + $0x28] sm:$0xf]
        %v437 = vld [vmem:[%s330 + $0x2c] sm:$0xf]
        %v438 = vunpack.c.l.bf16 %v426
        %v439 = vunpack.c.l.bf16 %v427
        %v440 = vunpack.c.l.bf16 %v428
        %v441 = vunpack.c.l.bf16 %v429
        %v442 = vunpack.c.l.bf16 %v430
        %v443 = vunpack.c.l.bf16 %v431
        %v444 = vunpack.c.l.bf16 %v432
        %v445 = vunpack.c.l.bf16 %v433
        %v446 = vunpack.c.l.bf16 %v434
        %v447 = vunpack.c.l.bf16 %v435
        %v448 = vunpack.c.l.bf16 %v436
        %v449 = vunpack.c.l.bf16 %v437
        %v450 = vadd.f32 %v414, %v438
        %v451 = vadd.f32 %v415, %v439
        %v452 = vadd.f32 %v416, %v440
        %v453 = vadd.f32 %v417, %v441
        %v454 = vadd.f32 %v418, %v442
        %v455 = vadd.f32 %v419, %v443
        %v456 = vadd.f32 %v420, %v444
        %v457 = vadd.f32 %v421, %v445
        %v458 = vadd.f32 %v422, %v446
        %v459 = vadd.f32 %v423, %v447
        %v460 = vadd.f32 %v424, %v448
        %v461 = vadd.f32 %v425, %v449
        %vm462 = vcmask 785408
        %v463 = vsel %vm462, %v450, -inf
        %464 = vmax.xlane.f32.xlu0 %v463
        %v465 = vpop.xlane.xlu0 %464
        %v466 = vsel %vm462, %v451, -inf
        %467 = vmax.xlane.f32.xlu0 %v466
        %v468 = vpop.xlane.xlu0 %467
        %v469 = vsel %vm462, %v452, -inf
        %470 = vmax.xlane.f32.xlu0 %v469
        %v471 = vpop.xlane.xlu0 %470
        %v472 = vsel %vm462, %v453, -inf
        %473 = vmax.xlane.f32.xlu0 %v472
        %v474 = vpop.xlane.xlu0 %473
        %v475 = vsel %vm462, %v454, -inf
        %476 = vmax.xlane.f32.xlu0 %v475
        %v477 = vpop.xlane.xlu0 %476
        %v478 = vsel %vm462, %v455, -inf
        %479 = vmax.xlane.f32.xlu0 %v478
        %v480 = vpop.xlane.xlu0 %479
        %v481 = vsel %vm462, %v456, -inf
        %482 = vmax.xlane.f32.xlu0 %v481
        %v483 = vpop.xlane.xlu0 %482
        %v484 = vsel %vm462, %v457, -inf
        %485 = vmax.xlane.f32.xlu0 %v484
        %v486 = vpop.xlane.xlu0 %485
        %v487 = vsel %vm462, %v458, -inf
        %488 = vmax.xlane.f32.xlu0 %v487
        %v489 = vpop.xlane.xlu0 %488
        %v490 = vsel %vm462, %v459, -inf
        %491 = vmax.xlane.f32.xlu0 %v490
        %v492 = vpop.xlane.xlu0 %491
        %v493 = vsel %vm462, %v460, -inf
        %494 = vmax.xlane.f32.xlu0 %v493
        %v495 = vpop.xlane.xlu0 %494
        %v496 = vsel %vm462, %v461, -inf
        %497 = vmax.xlane.f32.xlu0 %v496
        %v498 = vpop.xlane.xlu0 %497
        %v499 = vsub.f32 %v450, %v465
        %v500 = vsub.f32 %v451, %v468
        %v501 = vsub.f32 %v452, %v471
        %v502 = vsub.f32 %v453, %v474
        %v503 = vsub.f32 %v454, %v477
        %v504 = vsub.f32 %v455, %v480
        %v505 = vsub.f32 %v456, %v483
        %v506 = vsub.f32 %v457, %v486
        %v507 = vsub.f32 %v458, %v489
        %v508 = vsub.f32 %v459, %v492
        %v509 = vsub.f32 %v460, %v495
        %v510 = vsub.f32 %v461, %v498
        %v511 = vmul.f32 %v499, 1.442695
        %v512 = vpow.pop %v511
        %v513 = vmul.f32 %v500, 1.442695
        %v514 = vpow.pop %v513
        %v515 = vmul.f32 %v501, 1.442695
        %v516 = vpow.pop %v515
        %v517 = vmul.f32 %v502, 1.442695
        %v518 = vpow.pop %v517
        %v519 = vmul.f32 %v503, 1.442695
        %v520 = vpow.pop %v519
        %v521 = vmul.f32 %v504, 1.442695
        %v522 = vpow.pop %v521
        %v523 = vmul.f32 %v505, 1.442695
        %v524 = vpow.pop %v523
        %v525 = vmul.f32 %v506, 1.442695
        %v526 = vpow.pop %v525
        %v527 = vmul.f32 %v507, 1.442695
        %v528 = vpow.pop %v527
        %v529 = vmul.f32 %v508, 1.442695
        %v530 = vpow.pop %v529
        %v531 = vmul.f32 %v509, 1.442695
        %v532 = vpow.pop %v531
        %v533 = vmul.f32 %v510, 1.442695
        %v534 = vpow.pop %v533
        %v535 = vsel %vm462, %v512, 0.0
        %536 = vadd.xlane.f32.xlu0 %v535
        %v537 = vpop.xlane.xlu0 %536
        %v538 = vsel %vm462, %v514, 0.0
        %539 = vadd.xlane.f32.xlu0 %v538
        %v540 = vpop.xlane.xlu0 %539
        %v541 = vsel %vm462, %v516, 0.0
        %542 = vadd.xlane.f32.xlu0 %v541
        %v543 = vpop.xlane.xlu0 %542
        %v544 = vsel %vm462, %v518, 0.0
        %545 = vadd.xlane.f32.xlu0 %v544
        %v546 = vpop.xlane.xlu0 %545
        %v547 = vsel %vm462, %v520, 0.0
        %548 = vadd.xlane.f32.xlu0 %v547
        %v549 = vpop.xlane.xlu0 %548
        %v550 = vsel %vm462, %v522, 0.0
        %551 = vadd.xlane.f32.xlu0 %v550
        %v552 = vpop.xlane.xlu0 %551
        %v553 = vsel %vm462, %v524, 0.0
        %554 = vadd.xlane.f32.xlu0 %v553
        %v555 = vpop.xlane.xlu0 %554
        %v556 = vsel %vm462, %v526, 0.0
        %557 = vadd.xlane.f32.xlu0 %v556
        %v558 = vpop.xlane.xlu0 %557
        %v559 = vsel %vm462, %v528, 0.0
        %560 = vadd.xlane.f32.xlu0 %v559
        %v561 = vpop.xlane.xlu0 %560
        %v562 = vsel %vm462, %v530, 0.0
        %563 = vadd.xlane.f32.xlu0 %v562
        %v564 = vpop.xlane.xlu0 %563
        %v565 = vsel %vm462, %v532, 0.0
        %566 = vadd.xlane.f32.xlu0 %v565
        %v567 = vpop.xlane.xlu0 %566
        %v568 = vsel %vm462, %v534, 0.0
        %569 = vadd.xlane.f32.xlu0 %v568
        %v570 = vpop.xlane.xlu0 %569
        %v571 = vrcp.pop %v537
        %v572 = vrcp.pop %v540
        %v573 = vrcp.pop %v543
        %v574 = vrcp.pop %v546
        %v575 = vrcp.pop %v549
        %v576 = vrcp.pop %v552
        %v577 = vrcp.pop %v555
        %v578 = vrcp.pop %v558
        %v579 = vrcp.pop %v561
        %v580 = vrcp.pop %v564
        %v581 = vrcp.pop %v567
        %v582 = vrcp.pop %v570
        %v583 = vmul.f32 %v512, %v571
        %v584 = vmul.f32 %v514, %v572
        %v585 = vmul.f32 %v516, %v573
        %v586 = vmul.f32 %v518, %v574
        %v587 = vmul.f32 %v520, %v575
        %v588 = vmul.f32 %v522, %v576
        %v589 = vmul.f32 %v524, %v577
        %v590 = vmul.f32 %v526, %v578
        %v591 = vmul.f32 %v528, %v579
        %v592 = vmul.f32 %v530, %v580
        %v593 = vmul.f32 %v532, %v581
        %v594 = vmul.f32 %v534, %v582
        %s595 = smul.f32 %s380, %s382
        %v596 = vlaneseq
        %v597 = vshrl.u32 %v596, 7
        %v598 = vlaneseq
        %v599 = vand.u32 %v598, 127
        %vm600 = vcmp.eq.s32.totalorder %v597, 0
        %vm601 = vcmp.lt.s32.totalorder %v599, 32
        %vm602 = vmand %vm600, %vm601
        %vm603 = vcmp.eq.s32.totalorder %v597, 7
        %vm604 = vcmp.ge.s32.totalorder %v599, 64
        %vm605 = vmand %vm603, %vm604
        %vm606 = vmor %vm602, %vm605
        %v607 = vstv %s595
        %v608 = vsel %vm606, 0.0, %v607
        %v609 = vpack.c.bf16 %v608, %v608
        %v610 = vpack.c.bf16 %v584, %v583
        %v611 = vpack.c.bf16 %v586, %v585
        %v612 = vpack.c.bf16 %v588, %v587
        %v613 = vpack.c.bf16 %v590, %v589
        %v614 = vpack.c.bf16 %v592, %v591
        %v615 = vpack.c.bf16 %v594, %v593
        %v617 = vsel %vm462, %v609, 0
        %v620 = vsel %vm462, %v610, 0
        %v623 = vsel %vm462, %v611, 0
        %v626 = vsel %vm462, %v612, 0
        %v629 = vsel %vm462, %v613, 0
        %v632 = vsel %vm462, %v614, 0
        %v635 = vsel %vm462, %v615, 0
        %637 = vmatprep.subr.bf16.mxu0 0
        %638 = vmatpush1.bf16.xpose.msra.mxu0 0
        %639 = vmatprep.subr.bf16.mxu0 0
        %640 = vmatpush1.bf16.xpose.msra.mxu0 0
        %641 = vmatprep.subr.bf16.mxu0 0
        %642 = vmatpush1.bf16.xpose.msra.mxu0 %v635
        %643 = vmatprep.subr.bf16.mxu0 0
        %644 = vmatpush1.bf16.xpose.msra.mxu0 %v632
        %645 = vmatprep.subr.bf16.mxu0 0
        %646 = vmatpush1.bf16.xpose.msra.mxu0 %v629
        %647 = vmatprep.subr.bf16.mxu0 0
        %648 = vmatpush1.bf16.xpose.msra.mxu0 %v626
        %649 = vmatprep.subr.bf16.mxu0 0
        %650 = vmatpush1.bf16.xpose.msra.mxu0 %v623
        %651 = vmatprep.subr.bf16.mxu0 0
        %652 = vmatpush1.bf16.xpose.msra.mxu0 %v620
        %653 = vmatprep.subr.bf16.mxu0 0
        %654 = vmatpush2.bf16.xpose.msra.mxu0 0
        %655 = vmatprep.subr.bf16.mxu0 0
        %656 = vmatpush2.bf16.xpose.msra.mxu0 0
        %657 = vmatprep.subr.bf16.mxu0 0
        %658 = vmatpush2.bf16.xpose.msra.mxu0 0
        %659 = vmatprep.subr.bf16.mxu0 0
        %660 = vmatpush2.bf16.xpose.msra.mxu0 0
        %661 = vmatprep.subr.bf16.mxu0 0
        %662 = vmatpush2.bf16.xpose.msra.mxu0 0
        %663 = vmatprep.subr.bf16.mxu0 0
        %664 = vmatpush2.bf16.xpose.msra.mxu0 0
        %665 = vmatprep.subr.bf16.mxu0 0
        %666 = vmatpush2.bf16.xpose.msra.mxu0 0
        %667 = vmatprep.subr.bf16.mxu0 0
        %668 = vmatpush2.bf16.xpose.msra.mxu0 0
        %669 = vmatprep.mubr.bf16.mxu0 0
        %670 = vmatmul.mubr.bf16.gmra.mxu0 %v617
        %v671 = vpop.f32.mrf.mxu0
        %v672 = vadd.f32 0.0, %v671
        %v673 = vpop.f32.mrf.mxu0
        %v674 = vpop.f32.mrf.mxu0
        %v675 = vpop.f32.mrf.mxu0
        %676 = vdwg.mxu0
        %v677 = vrot.slane %v672, 1
        %679 = vrot.lane.b32.xlu0 %v672, 64
        %v680 = vpop.permute.xlu0 %679
        %v682 = vrot.slane %v680, 7
        %v683 = vsel %vm603, 0.0, %v677
        %685 = vrot.lane.b32.xlu0 %v683, 32
        %v686 = vpop.permute.xlu0 %685
        %v688 = vadd.f32 %v672, %v686
        %v689 = vsel %vm600, 0.0, %v682
        %691 = vrot.lane.b32.xlu0 %v689, 32
        %v692 = vpop.permute.xlu0 %691
        %v694 = vadd.f32 %v688, %v692
        %v695 = vld [vmem:[#allocation2] sm:$0xff]
        %v696 = vstv %s384
        %v697 = vmul.f32 %v694, %v696
        %699 = vrot.lane.b32.xlu0 %v697, 96
        %v700 = vpop.permute.xlu0 %699
        %v702 = vadd.f32 %v695, %v700
        %v703 = vstv %s386
        %v704 = vadd.f32 %v702, %v703
        %v705 = vstv %s388
        %s706 = sadd.s32 %s378, 16
        %s707 = sld [smem:[#allocation7 + %s706]]
        %v708 = vstv %s707
        %s709 = sadd.s32 %s378, 7
        %s710 = sld [smem:[#allocation7 + %s709]]
        %v711 = vstv %s710
        %v712 = vmul.f32 %v705, %v711
        %s713 = sadd.s32 %s378, 10
        %s714 = sld [smem:[#allocation7 + %s713]]
        %v715 = vstv %s714
        %v716 = vadd.f32 %v712, %v715
        %v717 = vmul.f32 %v716, %v716
        %v718 = vmul.f32 %v716, %v717
        %v719 = vmul.f32 %v718, 0.044715
        %v720 = vadd.f32 %v716, %v719
        %v721 = vmul.f32 %v720, 0.7978846
        %v722 = vtanh.pop %v721
        %v723 = vadd.f32 %v722, 1.0
        %v724 = vmul.f32 %v723, 0.5
        %v725 = vmul.f32 %v716, %v724
        %s726 = sadd.s32 %s378, 13
        %s727 = sld [smem:[#allocation7 + %s726]]
        %v728 = vstv %s727
        %v729 = vmul.f32 %v725, %v728
        %v730 = vadd.f32 %v708, %v729
        %s731 = sadd.s32 %s378, 8
        %s732 = sld [smem:[#allocation7 + %s731]]
        %v733 = vstv %s732
        %v734 = vmul.f32 %v705, %v733
        %s735 = sadd.s32 %s378, 11
        %s736 = sld [smem:[#allocation7 + %s735]]
        %v737 = vstv %s736
        %v738 = vadd.f32 %v734, %v737
        %v739 = vmul.f32 %v738, %v738
        %v740 = vmul.f32 %v738, %v739
        %v741 = vmul.f32 %v740, 0.044715
        %v742 = vadd.f32 %v738, %v741
        %v743 = vmul.f32 %v742, 0.7978846
        %v744 = vtanh.pop %v743
        %v745 = vadd.f32 %v744, 1.0
        %v746 = vmul.f32 %v745, 0.5
        %v747 = vmul.f32 %v738, %v746
        %s748 = sadd.s32 %s378, 14
        %s749 = sld [smem:[#allocation7 + %s748]]
        %v750 = vstv %s749
        %v751 = vmul.f32 %v747, %v750
        %v752 = vadd.f32 %v730, %v751
        %s753 = sadd.s32 %s378, 9
        %s754 = sld [smem:[#allocation7 + %s753]]
        %v755 = vstv %s754
        %v756 = vmul.f32 %v705, %v755
        %s757 = sadd.s32 %s378, 12
        %s758 = sld [smem:[#allocation7 + %s757]]
        %v759 = vstv %s758
        %v760 = vadd.f32 %v756, %v759
        %v761 = vmul.f32 %v760, %v760
        %v762 = vmul.f32 %v760, %v761
        %v763 = vmul.f32 %v762, 0.044715
        %v764 = vadd.f32 %v760, %v763
        %v765 = vmul.f32 %v764, 0.7978846
        %v766 = vtanh.pop %v765
        %v767 = vadd.f32 %v766, 1.0
        %v768 = vmul.f32 %v767, 0.5
        %v769 = vmul.f32 %v760, %v768
        %s770 = sadd.s32 %s378, 15
        %s771 = sld [smem:[#allocation7 + %s770]]
        %v772 = vstv %s771
        %v773 = vmul.f32 %v769, %v772
        %v774 = vadd.f32 %v752, %v773
        %v775 = vadd.f32 %v704, %v774
        %vm776 = vcmask 261120
        %777 = vst.msk [vmem:[#allocation2] sm:$0xff] %vm776, %v775
        %p778 = scmp.eq.s32.totalorder %s32, 3
        // Predicated region
        $region65: #{tpu_custom_call.1} parent=43 // pred_check
          %p779 = pneg %p778
        $region66: #{tpu_custom_call.1} parent=43 // pred_check_branch
          %781 = sbr.rel (%p779) target = $region68
        $region67: #{tpu_custom_call.1} parent=43 // pred_region
          %v782 = vld [vmem:[%s4] sm:$0x3]
          %v783 = vld [vmem:[%s5] sm:$0x3]
          %785 = vset.pattern.permute.xlu0 0
          %786 = vperm.xlu0 %785, %v783
          %v787 = vpop.permute.xlu0 %786
          %v790 = vsel %vm776, %v782, 0
          %v793 = vsel %vm776, %v775, 0
          %795 = vmatprep.subr.mxu0 0.0
          %796 = vmatpush1.xpose.msra.mxu0 0.0
          %797 = vmatprep.subr.mxu0 0.0
          %798 = vmatpush1.xpose.msra.mxu0 0.0
          %799 = vmatprep.subr.mxu0 0.0
          %800 = vmatpush1.xpose.msra.mxu0 0.0
          %801 = vmatprep.subr.mxu0 0.0
          %802 = vmatpush1.xpose.msra.mxu0 0.0
          %803 = vmatprep.subr.mxu0 0.0
          %804 = vmatpush1.xpose.msra.mxu0 0.0
          %805 = vmatprep.subr.mxu0 0.0
          %806 = vmatpush1.xpose.msra.mxu0 0.0
          %807 = vmatprep.subr.mxu0 0.0
          %808 = vmatpush1.xpose.msra.mxu0 0.0
          %809 = vmatprep.subr.mxu0 0.0
          %810 = vmatpush1.xpose.msra.mxu0 0.0
          %811 = vmatprep.subr.mxu0 0.0
          %812 = vmatpush1.xpose.msra.mxu0 0.0
          %813 = vmatprep.subr.mxu0 0.0
          %814 = vmatpush1.xpose.msra.mxu0 0.0
          %815 = vmatprep.subr.mxu0 0.0
          %816 = vmatpush1.xpose.msra.mxu0 0.0
          %817 = vmatprep.subr.mxu0 0.0
          %818 = vmatpush1.xpose.msra.mxu0 0.0
          %819 = vmatprep.subr.mxu0 0.0
          %820 = vmatpush1.xpose.msra.mxu0 0.0
          %821 = vmatprep.subr.mxu0 0.0
          %822 = vmatpush1.xpose.msra.mxu0 0.0
          %823 = vmatprep.subr.mxu0 0.0
          %824 = vmatpush1.xpose.msra.mxu0 0.0
          %825 = vmatprep.subr.mxu0 0.0
          %826 = vmatpush1.xpose.msra.mxu0 %v793
          %827 = vmatprep.subr.mxu0 0.0
          %828 = vmatpush2.xpose.msra.mxu0 0.0
          %829 = vmatprep.subr.mxu0 0.0
          %830 = vmatpush2.xpose.msra.mxu0 0.0
          %831 = vmatprep.subr.mxu0 0.0
          %832 = vmatpush2.xpose.msra.mxu0 0.0
          %833 = vmatprep.subr.mxu0 0.0
          %834 = vmatpush2.xpose.msra.mxu0 0.0
          %835 = vmatprep.subr.mxu0 0.0
          %836 = vmatpush2.xpose.msra.mxu0 0.0
          %837 = vmatprep.subr.mxu0 0.0
          %838 = vmatpush2.xpose.msra.mxu0 0.0
          %839 = vmatprep.subr.mxu0 0.0
          %840 = vmatpush2.xpose.msra.mxu0 0.0
          %841 = vmatprep.subr.mxu0 0.0
          %842 = vmatpush2.xpose.msra.mxu0 0.0
          %843 = vmatprep.subr.mxu0 0.0
          %844 = vmatpush2.xpose.msra.mxu0 0.0
          %845 = vmatprep.subr.mxu0 0.0
          %846 = vmatpush2.xpose.msra.mxu0 0.0
          %847 = vmatprep.subr.mxu0 0.0
          %848 = vmatpush2.xpose.msra.mxu0 0.0
          %849 = vmatprep.subr.mxu0 0.0
          %850 = vmatpush2.xpose.msra.mxu0 0.0
          %851 = vmatprep.subr.mxu0 0.0
          %852 = vmatpush2.xpose.msra.mxu0 0.0
          %853 = vmatprep.subr.mxu0 0.0
          %854 = vmatpush2.xpose.msra.mxu0 0.0
          %855 = vmatprep.subr.mxu0 0.0
          %856 = vmatpush2.xpose.msra.mxu0 0.0
          %857 = vmatprep.subr.mxu0 0.0
          %858 = vmatpush2.xpose.msra.mxu0 0.0
          %859 = vmatprep.mubr.f32.mxu0 0.0
          %860 = vmatmul.mubr.f32.gmra.mxu0 %v790
          %v861 = vpop.f32.mrf.mxu0
          %v862 = vadd.f32 %v787, %v861
          %v863 = vpop.f32.mrf.mxu0
          %864 = vdwg.mxu0
          %vm865 = vcmask 58368
          %866 = vst.msk [vmem:[%s369] sm:$0x3] %vm865, %v862
        $region68: #{tpu_custom_call.1} parent=43 // pred_fallthru
          _
        %s867 = sand.u32 %s188, 1
        %s868 = scalar_lea.sflag [#allocation5], %s867
        %s869 = sand.u32 %s188, 1
        %s870 = smul.addr %s869, 2
        %s871 = scalar_lea.vmem [#allocation11], %s870
        // Predicated region
        $region69: #{tpu_custom_call.1} parent=43 // pred_check
          %p872 = pneg %p198
        $region70: #{tpu_custom_call.1} parent=43 // pred_check_branch
          %874 = sbr.rel (%p872) target = $region72
        $region71: #{tpu_custom_call.1} parent=43 // pred_region
          %s876 = ssub.s32 32, 32
          %877 = vsyncadd %s868, %s876
          %s878 = smul.addr %s31, 32
          %s879 = scalar_lea.hbm %s6, %s878
          %s881 = sshll.u32 %s871, 4
          %s882 = int_to_ptr.vmem [resolvable:$true] %s881
          %884 = dma.vmem_to_hbm [thread:$0]  %s882, 32, %s879, %s868
        $region72: #{tpu_custom_call.1} parent=43 // pred_fallthru
          _
      $region44: #{tpu_custom_call.1} parent=5 // pred_fallthru
        _
      %p885 = scmp.le.s32.totalorder 2, %s22
      // Predicated region
      $region73: #{tpu_custom_call.1} parent=5 // pred_check
        %p886 = pneg %p885
      $region74: #{tpu_custom_call.1} parent=5 // pred_check_branch
        %888 = sbr.rel (%p886) target = $region76
      $region75: #{tpu_custom_call.1} parent=5 // pred_region
        %s889 = ssub.s32 %s22, 2
        // Predicated region
        $region77: #{tpu_custom_call.1} parent=75 // pred_check
          %p890 = pneg %p204
        $region78: #{tpu_custom_call.1} parent=75 // pred_check_branch
          %892 = sbr.rel (%p890) target = $region80
        $region79: #{tpu_custom_call.1} parent=75 // pred_region
          %s893 = sand.u32 %s189, 1
          %s894 = scalar_lea.sflag [#allocation5], %s893
          %s895 = sand.u32 %s189, 1
          %s896 = smul.addr %s895, 2
          %s897 = scalar_lea.vmem [#allocation11], %s896
          %898 = dma.done %s894, 32
        $region80: #{tpu_custom_call.1} parent=75 // pred_fallthru
          _
      $region76: #{tpu_custom_call.1} parent=5 // pred_fallthru
        _
    $region6: #{tpu_custom_call.1} parent=1 // loop_footer
      %s26 = sadd.s32 1, %s22
    $region7: #{tpu_custom_call.1} parent=1 // loop_footer_branch
      %21 = sbr.rel target = $region3
    $region8: #{tpu_custom_call.1} parent=1 // loop_exit
      _
    %899 = vsyncpa [#allocation4], 1
    %s900 = scalar_lea.sflag [#allocation4], 1
    %901 = vsyncpa %s900, 1
    %902 = vsyncpa [#allocation9], 1
    %s903 = scalar_lea.sflag [#allocation9], 1
    %904 = vsyncpa %s903, 1
    %905 = vsyncpa [#allocation5], 1
    %s906 = scalar_lea.sflag [#allocation5], 1
    %907 = vsyncpa %s906, 1
    %908 = vsyncpa [#allocation6], 1
    %s909 = scalar_lea.sflag [#allocation6], 1
    %910 = vsyncpa %s909, 1

</llo_original>
